<compile_context>
chip_gen: v5e
topology: v5e:2x2
jax: 0.10.0
libtpu: 0.0.40
codegen_flags: <defaults>
</compile_context>

<pallas_src>
from typing import NamedTuple

import jax
import jax.numpy as jnp
from jax.experimental import pallas as pl
from jax.experimental.pallas import tpu as pltpu

_LANE = 128


def _round_up(v, m):
    return ((v + m - 1) // m) * m


def _cdiv(a, b):
    return -(-a // b)


def _sublane(dtype):
    # Sublane alignment of `dtype` in HBM/VMEM layout: 8 (4B), 16 (2B), 32 (1B).
    return 8 * max(1, 4 // jnp.dtype(dtype).itemsize)


def _vmem_capacity_bytes():
    try:
        return int(pltpu.get_tpu_info().vmem_capacity_bytes)
    except Exception:
        return 64 << 20  # conservative fallback (v7x per-TensorCore VMEM)


def _make_classifier_kernel(compute_dtype):
    def kernel(x_ref, w1_ref, b1_ref, w2_ref, b2_ref, o_ref):
        # fc1 -> ReLU -> fc2 fused; both matmuls hit the MXU with f32 accumulation.
        x = x_ref[...].astype(compute_dtype)      # in-kernel cast: no HBM copy of x
        h = jnp.dot(x, w1_ref[...], preferred_element_type=jnp.float32)
        h = jnp.maximum(h + b1_ref[...], 0.0)     # bias + ReLU on the f32 accumulator
        y = jnp.dot(h.astype(w2_ref.dtype), w2_ref[...],
                    preferred_element_type=jnp.float32)
        o_ref[...] = (y + b2_ref[...]).astype(o_ref.dtype)
    return kernel


def _weight_spec(block_shape, single_buffer):
    index_map = lambda i: (0, 0)
    if single_buffer:
        try:
            # Grid-invariant operand: one VMEM copy is enough (saves a full w1+w2).
            return pl.BlockSpec(block_shape, index_map, pipeline_mode=pl.Buffered(1))
        except Exception:
            pass
    return pl.BlockSpec(block_shape, index_map)


class ClassifierParams(NamedTuple):
    w1: jax.Array
    b1: jax.Array
    w2: jax.Array
    b2: jax.Array
    in_dim: int
    k_dim: int
    hidden: int
    out_dim: int
    out_p: int
    compute_dtype: object


def prepare_params(w1, b1, w2, b2, *, compute_dtype=jnp.bfloat16, lane_dense_out=None):
    """Pad / cast the weights ONCE (cache the result; the per-forward path is copy-free).

    w1: [input_size, H] (transposed vs. PyTorch), b1: [H] or [1, H],
    w2: [H, num_classes], b2: [num_classes] or [1, num_classes].
    """
    cdt = jnp.dtype(compute_dtype)
    in_dim, H = w1.shape
    out_dim = w2.shape[1]

    # Pad K in HBM only when in_dim is already close to a multiple of 128; otherwise
    # pass the unpadded K (full-array-dim block) and save x HBM bytes (mem-bound kernel).
    in_p = _round_up(in_dim, _LANE)
    pad_k = (in_p != in_dim) and (in_p <= int(in_dim * 1.1))
    k_dim = in_p if pad_k else in_dim

    # Lane-dense 128-wide output only when x reads dominate; otherwise keep the thin
    # num_classes-wide output (masked vst) and cut writeback bytes ~21x.
    if lane_dense_out is None:
        lane_dense_out = in_dim >= 1024
    out_p = _round_up(out_dim, _LANE) if lane_dense_out else out_dim

    w1c = w1.astype(cdt)
    if pad_k:
        w1c = jnp.zeros((k_dim, H), cdt).at[:in_dim, :].set(w1c)
    if out_p != out_dim:
        w2c = jnp.zeros((H, out_p), cdt).at[:, :out_dim].set(w2.astype(cdt))
        b2c = jnp.zeros((1, out_p), jnp.float32).at[:, :out_dim].set(
            b2.reshape(1, out_dim).astype(jnp.float32))
    else:
        w2c = w2.astype(cdt)
        b2c = b2.reshape(1, out_dim).astype(jnp.float32)
    b1c = b1.reshape(1, H).astype(jnp.float32)  # biases stay f32 (added to the f32 acc)

    return ClassifierParams(w1=w1c, b1=b1c, w2=w2c, b2=b2c,
                            in_dim=in_dim, k_dim=k_dim, hidden=H,
                            out_dim=out_dim, out_p=out_p, compute_dtype=cdt)


def classifier_forward(x, params: ClassifierParams, *, block_m=256):
    """y = relu(x @ w1 + b1) @ w2 + b2   (PyTorch Classifier.forward)."""
    B, in_dim = x.shape
    assert in_dim == params.in_dim
    w1, b1, w2, b2 = params.w1, params.b1, params.w2, params.b2
    cdt = params.compute_dtype
    k_dim, H, out_p, out_dim = params.k_dim, params.hidden, params.out_p, params.out_dim
    out_dtype = x.dtype

    x_item = jnp.dtype(x.dtype).itemsize
    out_item = jnp.dtype(out_dtype).itemsize
    sub = max(_sublane(x.dtype), _sublane(out_dtype))

    # ---- pick the batch tile: minimize last-tile padding, keep sublane alignment ----
    if B <= block_m:
        if B >= 2 * sub and B % (2 * sub) == 0:
            tm = B // 2   # two grid steps -> the "parallel" axis can use both TCs (v7x)
        else:
            tm = B        # one full-batch tile (block == full array dim, no padding)
    else:
        n_tiles = _cdiv(B, block_m)
        tm = _round_up(_cdiv(B, n_tiles), sub)

    # ---- VMEM budget: resident weights + double-buffered x/out + f32 intermediates ----
    w_bytes = sum(int(a.size) * a.dtype.itemsize for a in (w1, b1, w2, b2))
    cap = _vmem_capacity_bytes()
    budget = int(cap * 0.85)  # ~54 MiB on v7x (64 MiB VMEM), ~108 MiB on v5e/v6e (128 MiB)

    def _footprint(tm_, weight_copies):
        return (2 * tm_ * k_dim * x_item          # double-buffered x tiles
                + tm_ * k_dim * cdt.itemsize      # in-kernel cast copy of x
                + 2 * tm_ * out_p * out_item      # double-buffered out tiles
                + weight_copies * w_bytes         # VMEM-resident weights / biases
                + tm_ * H * 4                     # f32 hidden activation
                + tm_ * out_p * 4)                # f32 logits before the final cast

    while tm > sub and _footprint(tm, 1) + (4 << 20) > budget:
        tm = max(sub, _round_up(tm // 2, sub))
    # TODO(synk): if the resident weights alone exceed `budget`, add a K/H grid axis
    # with a VMEM accumulator instead of keeping w1/w2 fully resident.

    b_p = _round_up(B, tm)
    grid = (b_p // tm,)

    # ---- x goes straight to the kernel unless batch/K padding is actually required ----
    if b_p != B or k_dim != in_dim:
        xp = jnp.zeros((b_p, k_dim), x.dtype).at[:B, :in_dim].set(x)
    else:
        xp = x

    cost = pl.CostEstimate(
        flops=2 * b_p * (k_dim * H + H * out_p),
        transcendentals=0,
        bytes_accessed=int(b_p * k_dim * x_item + w_bytes + b_p * out_p * out_item),
    )
    kernel_fn = _make_classifier_kernel(cdt)

    def _run(single_buffer_weights):
        wf = 1 if single_buffer_weights else 2
        vmem_limit = int(min(max(_footprint(tm, wf) + (4 << 20), 16 << 20), budget))
        return pl.pallas_call(
            kernel_fn,
            out_shape=jax.ShapeDtypeStruct((b_p, out_p), out_dtype),
            grid=grid,
            in_specs=[
                pl.BlockSpec((tm, k_dim), lambda i: (i, 0)),      # streamed x tile
                _weight_spec((k_dim, H), single_buffer_weights),  # resident w1
                _weight_spec((1, H), single_buffer_weights),      # resident b1
                _weight_spec((H, out_p), single_buffer_weights),  # resident w2
                _weight_spec((1, out_p), single_buffer_weights),  # resident b2
            ],
            out_specs=pl.BlockSpec((tm, out_p), lambda i: (i, 0)),
            compiler_params=pltpu.CompilerParams(
                dimension_semantics=("parallel",),
                vmem_limit_bytes=vmem_limit,
            ),
            cost_estimate=cost,
        )(xp, w1, b1, w2, b2)

    try:
        out_padded = _run(True)       # single-buffered resident weights (Buffered(1))
    except Exception:
        out_padded = _run(False)      # safe fallback: default double-buffering

    # Slice off batch padding (if any) and padded output lanes (if lane-dense).
    return out_padded[:B, :out_dim]


def init_params(key, input_size, hidden_size, num_classes=6, dtype=jnp.float32):
    """Deterministic init mimicking nn.Linear's U(-1/sqrt(fan_in), 1/sqrt(fan_in))."""
    k1, k2, k3, k4 = jax.random.split(key, 4)
    bound1 = 1.0 / jnp.sqrt(input_size)
    bound2 = 1.0 / jnp.sqrt(hidden_size)
    # Stored pre-transposed relative to PyTorch ([out, in] -> [in, out]).
    w1 = jax.random.uniform(k1, (input_size, hidden_size), dtype, -bound1, bound1)
    b1 = jax.random.uniform(k2, (1, hidden_size), dtype, -bound1, bound1)
    w2 = jax.random.uniform(k3, (hidden_size, num_classes), dtype, -bound2, bound2)
    b2 = jax.random.uniform(k4, (1, num_classes), dtype, -bound2, bound2)
    return w1, b1, w2, b2


def reference_forward(x, w1, b1, w2, b2):
    h = jnp.maximum(x @ w1 + b1, 0.0)
    return h @ w2 + b2


if __name__ == "__main__":
    key = jax.random.PRNGKey(0)
    kx, kp = jax.random.split(key)

    batch = 8
    input_size = 32
    hidden_size = 32
    num_classes = 6

    x = jax.random.normal(kx, (batch, input_size), jnp.float32)
    w1, b1, w2, b2 = init_params(kp, input_size, hidden_size, num_classes)
    ref = reference_forward(x, w1, b1, w2, b2)

    # f32 MXU-input path: matches the PyTorch reference tightly.
    params_f32 = prepare_params(w1, b1, w2, b2, compute_dtype=jnp.float32)
    out_f32 = jax.block_until_ready(classifier_forward(x, params_f32))
    assert out_f32.shape == (batch, num_classes)
    assert jnp.allclose(out_f32, ref, atol=1e-5, rtol=1e-5)

    # bf16 MXU-input path (default): f32 accumulation, looser tolerance.
    params_bf16 = prepare_params(w1, b1, w2, b2)
    out_bf16 = jax.block_until_ready(classifier_forward(x, params_bf16))
    assert out_bf16.shape == (batch, num_classes)
    assert jnp.allclose(out_bf16, ref, atol=5e-2, rtol=5e-2)

    print("KERNEL_OK")
</pallas_src>

<mosaic_0001>
module attributes {stable_mosaic.version = 11 : i64} {
  func.func @kernel(%arg0: i32, %arg1: memref<8x32xf32, #tpu.memory_space<vmem>>, %arg2: memref<32x32xf32, #tpu.memory_space<vmem>>, %arg3: memref<1x32xf32, #tpu.memory_space<vmem>>, %arg4: memref<32x6xf32, #tpu.memory_space<vmem>>, %arg5: memref<1x6xf32, #tpu.memory_space<vmem>>, %arg6: memref<8x6xf32, #tpu.memory_space<vmem>>) attributes {dimension_semantics = [#tpu.dimension_semantics<parallel>], iteration_bounds = array<i64: 1>, scalar_prefetch = 0 : i64, scratch_operands = 0 : i64, tpu.core_type = #tpu.core_type<tc>, window_params = [{transform_indices = @transform_0, window_bounds = array<i64: 8, 32>}, {pipeline_mode = #tpu.pipeline_mode<synchronous>, transform_indices = @transform_1, window_bounds = array<i64: 32, 32>}, {pipeline_mode = #tpu.pipeline_mode<synchronous>, transform_indices = @transform_2, window_bounds = array<i64: 1, 32>}, {pipeline_mode = #tpu.pipeline_mode<synchronous>, transform_indices = @transform_3, window_bounds = array<i64: 32, 6>}, {pipeline_mode = #tpu.pipeline_mode<synchronous>, transform_indices = @transform_4, window_bounds = array<i64: 1, 6>}, {transform_indices = @transform_5, window_bounds = array<i64: 8, 6>}]} {
    %c0 = arith.constant 0 : index
    %c0_0 = arith.constant 0 : index
    %0 = vector.load %arg1[%c0, %c0_0] : memref<8x32xf32, #tpu.memory_space<vmem>>, vector<8x32xf32>
    %c0_1 = arith.constant 0 : index
    %c0_2 = arith.constant 0 : index
    %1 = vector.load %arg2[%c0_1, %c0_2] : memref<32x32xf32, #tpu.memory_space<vmem>>, vector<32x32xf32>
    %cst = arith.constant dense<0.000000e+00> : vector<8x32xf32>
    %2 = tpu.matmul %0, %1, %cst {dimension_numbers = #tpu.dot_dimension_numbers<[1], [0], [0], [1], [0, 0, 1, 1], [], []>} : vector<8x32xf32>, vector<32x32xf32>, vector<8x32xf32> -> vector<8x32xf32>
    %c0_3 = arith.constant 0 : index
    %c0_4 = arith.constant 0 : index
    %3 = vector.load %arg3[%c0_3, %c0_4] : memref<1x32xf32, #tpu.memory_space<vmem>>, vector<1x32xf32>
    %4 = vector.broadcast %3 : vector<1x32xf32> to vector<8x32xf32>
    %5 = arith.addf %2, %4 : vector<8x32xf32>
    %cst_5 = arith.constant 0.000000e+00 : f32
    %6 = vector.broadcast %cst_5 : f32 to vector<8x32xf32>
    %7 = arith.maximumf %5, %6 : vector<8x32xf32>
    %c0_6 = arith.constant 0 : index
    %c0_7 = arith.constant 0 : index
    %8 = vector.load %arg4[%c0_6, %c0_7] : memref<32x6xf32, #tpu.memory_space<vmem>>, vector<32x6xf32>
    %cst_8 = arith.constant dense<0.000000e+00> : vector<8x6xf32>
    %9 = tpu.matmul %7, %8, %cst_8 {dimension_numbers = #tpu.dot_dimension_numbers<[1], [0], [0], [1], [0, 0, 1, 1], [], []>} : vector<8x32xf32>, vector<32x6xf32>, vector<8x6xf32> -> vector<8x6xf32>
    %c0_9 = arith.constant 0 : index
    %c0_10 = arith.constant 0 : index
    %10 = vector.load %arg5[%c0_9, %c0_10] : memref<1x6xf32, #tpu.memory_space<vmem>>, vector<1x6xf32>
    %11 = vector.broadcast %10 : vector<1x6xf32> to vector<8x6xf32>
    %12 = arith.addf %9, %11 : vector<8x6xf32>
    %c0_11 = arith.constant 0 : index
    %c0_12 = arith.constant 0 : index
    %13 = vector.load %arg6[%c0_11, %c0_12] : memref<8x6xf32, #tpu.memory_space<vmem>>, vector<8x6xf32>
    tpu.vector_store %arg6[%c0_11, %c0_12], %12 {strides = array<i32>} : memref<8x6xf32, #tpu.memory_space<vmem>>, vector<8x6xf32>,
    return
  }
  func.func @transform_0(%arg0: i32) -> (i32, i32) {
    %c0_i32 = arith.constant 0 : i32
    %c0_i32_0 = arith.constant 0 : i32
    return %arg0, %c0_i32 : i32, i32
  }
  func.func @transform_1(%arg0: i32) -> (i32, i32) {
    %c0_i32 = arith.constant 0 : i32
    %c0_i32_0 = arith.constant 0 : i32
    %c0_i32_1 = arith.constant 0 : i32
    return %c0_i32, %c0_i32_0 : i32, i32
  }
  func.func @transform_2(%arg0: i32) -> (i32, i32) {
    %c0_i32 = arith.constant 0 : i32
    %c0_i32_0 = arith.constant 0 : i32
    %c0_i32_1 = arith.constant 0 : i32
    return %c0_i32, %c0_i32_0 : i32, i32
  }
  func.func @transform_3(%arg0: i32) -> (i32, i32) {
    %c0_i32 = arith.constant 0 : i32
    %c0_i32_0 = arith.constant 0 : i32
    %c0_i32_1 = arith.constant 0 : i32
    return %c0_i32, %c0_i32_0 : i32, i32
  }
  func.func @transform_4(%arg0: i32) -> (i32, i32) {
    %c0_i32 = arith.constant 0 : i32
    %c0_i32_0 = arith.constant 0 : i32
    %c0_i32_1 = arith.constant 0 : i32
    return %c0_i32, %c0_i32_0 : i32, i32
  }
  func.func @transform_5(%arg0: i32) -> (i32, i32) {
    %c0_i32 = arith.constant 0 : i32
    %c0_i32_0 = arith.constant 0 : i32
    return %arg0, %c0_i32 : i32, i32
  }
}

module attributes {stable_mosaic.version = 11 : i64} {
  func.func @kernel(%arg0: i32, %arg1: memref<8x32xf32, #tpu.memory_space<vmem>>, %arg2: memref<32x32xf32, #tpu.memory_space<vmem>>, %arg3: memref<1x32xf32, #tpu.memory_space<vmem>>, %arg4: memref<32x6xf32, #tpu.memory_space<vmem>>, %arg5: memref<1x6xf32, #tpu.memory_space<vmem>>, %arg6: memref<8x6xf32, #tpu.memory_space<vmem>>) attributes {dimension_semantics = [#tpu.dimension_semantics<parallel>], iteration_bounds = array<i64: 1>, scalar_prefetch = 0 : i64, scratch_operands = 0 : i64, tpu.core_type = #tpu.core_type<tc>, window_params = [{transform_indices = @transform_0, window_bounds = array<i64: 8, 32>}, {pipeline_mode = #tpu.pipeline_mode<synchronous>, transform_indices = @transform_1, window_bounds = array<i64: 32, 32>}, {pipeline_mode = #tpu.pipeline_mode<synchronous>, transform_indices = @transform_2, window_bounds = array<i64: 1, 32>}, {pipeline_mode = #tpu.pipeline_mode<synchronous>, transform_indices = @transform_3, window_bounds = array<i64: 32, 6>}, {pipeline_mode = #tpu.pipeline_mode<synchronous>, transform_indices = @transform_4, window_bounds = array<i64: 1, 6>}, {transform_indices = @transform_5, window_bounds = array<i64: 8, 6>}]} {
    %c0 = arith.constant 0 : index
    %c0_0 = arith.constant 0 : index
    %0 = vector.load %arg1[%c0, %c0_0] : memref<8x32xf32, #tpu.memory_space<vmem>>, vector<8x32xf32>
    %c0_1 = arith.constant 0 : index
    %c0_2 = arith.constant 0 : index
    %1 = vector.load %arg2[%c0_1, %c0_2] : memref<32x32xf32, #tpu.memory_space<vmem>>, vector<32x32xf32>
    %cst = arith.constant dense<0.000000e+00> : vector<8x32xf32>
    %2 = tpu.matmul %0, %1, %cst {dimension_numbers = #tpu.dot_dimension_numbers<[1], [0], [0], [1], [0, 0, 1, 1], [], []>} : vector<8x32xf32>, vector<32x32xf32>, vector<8x32xf32> -> vector<8x32xf32>
    %c0_3 = arith.constant 0 : index
    %c0_4 = arith.constant 0 : index
    %3 = vector.load %arg3[%c0_3, %c0_4] : memref<1x32xf32, #tpu.memory_space<vmem>>, vector<1x32xf32>
    %4 = vector.broadcast %3 : vector<1x32xf32> to vector<8x32xf32>
    %5 = arith.addf %2, %4 : vector<8x32xf32>
    %cst_5 = arith.constant 0.000000e+00 : f32
    %6 = vector.broadcast %cst_5 : f32 to vector<8x32xf32>
    %7 = arith.maximumf %5, %6 : vector<8x32xf32>
    %c0_6 = arith.constant 0 : index
    %c0_7 = arith.constant 0 : index
    %8 = vector.load %arg4[%c0_6, %c0_7] : memref<32x6xf32, #tpu.memory_space<vmem>>, vector<32x6xf32>
    %cst_8 = arith.constant dense<0.000000e+00> : vector<8x6xf32>
    %9 = tpu.matmul %7, %8, %cst_8 {dimension_numbers = #tpu.dot_dimension_numbers<[1], [0], [0], [1], [0, 0, 1, 1], [], []>} : vector<8x32xf32>, vector<32x6xf32>, vector<8x6xf32> -> vector<8x6xf32>
    %c0_9 = arith.constant 0 : index
    %c0_10 = arith.constant 0 : index
    %10 = vector.load %arg5[%c0_9, %c0_10] : memref<1x6xf32, #tpu.memory_space<vmem>>, vector<1x6xf32>
    %11 = vector.broadcast %10 : vector<1x6xf32> to vector<8x6xf32>
    %12 = arith.addf %9, %11 : vector<8x6xf32>
    %c0_11 = arith.constant 0 : index
    %c0_12 = arith.constant 0 : index
    %13 = vector.load %arg6[%c0_11, %c0_12] : memref<8x6xf32, #tpu.memory_space<vmem>>, vector<8x6xf32>
    tpu.vector_store %arg6[%c0_11, %c0_12], %12 {strides = array<i32>} : memref<8x6xf32, #tpu.memory_space<vmem>>, vector<8x6xf32>,
    return
  }
  func.func @transform_0(%arg0: i32) -> (i32, i32) {
    %c0_i32 = arith.constant 0 : i32
    %c0_i32_0 = arith.constant 0 : i32
    return %arg0, %c0_i32 : i32, i32
  }
  func.func @transform_1(%arg0: i32) -> (i32, i32) {
    %c0_i32 = arith.constant 0 : i32
    %c0_i32_0 = arith.constant 0 : i32
    %c0_i32_1 = arith.constant 0 : i32
    return %c0_i32, %c0_i32_0 : i32, i32
  }
  func.func @transform_2(%arg0: i32) -> (i32, i32) {
    %c0_i32 = arith.constant 0 : i32
    %c0_i32_0 = arith.constant 0 : i32
    %c0_i32_1 = arith.constant 0 : i32
    return %c0_i32, %c0_i32_0 : i32, i32
  }
  func.func @transform_3(%arg0: i32) -> (i32, i32) {
    %c0_i32 = arith.constant 0 : i32
    %c0_i32_0 = arith.constant 0 : i32
    %c0_i32_1 = arith.constant 0 : i32
    return %c0_i32, %c0_i32_0 : i32, i32
  }
  func.func @transform_4(%arg0: i32) -> (i32, i32) {
    %c0_i32 = arith.constant 0 : i32
    %c0_i32_0 = arith.constant 0 : i32
    %c0_i32_1 = arith.constant 0 : i32
    return %c0_i32, %c0_i32_0 : i32, i32
  }
  func.func @transform_5(%arg0: i32) -> (i32, i32) {
    %c0_i32 = arith.constant 0 : i32
    %c0_i32_0 = arith.constant 0 : i32
    return %arg0, %c0_i32 : i32, i32
  }
}

</mosaic_0001>

<llo_original>
// kernel: tpu_custom_call.1
$region0: #{tpu_custom_call.1}
  #allocation0 [shape = 'u32[]', space=smem, size = 0x4, offset = 0x4, fixed_abs, tag = 'smem constant byte address 0x4 - core index']
  #allocation1 [shape = 'u32[72,128]{1,0:T(1,128)}', space=vmem, size = 0x9000, scoped, tag = 'internal scratch']
  %s0 = inlined_call_operand.vmem [shape: f32[8,32], index: 0, kind: input, shape index: {}]
  %s1 = inlined_call_operand.vmem [shape: f32[32,32], index: 1, kind: input, shape index: {}]
  %s2 = inlined_call_operand.vmem [shape: f32[1,32], index: 2, kind: input, shape index: {}]
  %s3 = inlined_call_operand.vmem [shape: f32[32,6], index: 3, kind: input, shape index: {}]
  %s4 = inlined_call_operand.vmem [shape: f32[1,6], index: 4, kind: input, shape index: {}]
  %s5 = inlined_call_operand.hbm [shape: f32[8,6], index: 5, kind: output, shape index: {}]
  %s6 = sld [smem:[#allocation0]]
  $region30: #{tpu_custom_call.1} parent=0
    _
  %s8 = ssub.s32 1, %s6
  %s9 = scalar_select 0, %s8, %s6
  $region1: #{tpu_custom_call.1} parent=0
    #allocation2 [shape = 'u8[4096]{0}', space=vmem, size = 0x1000, scoped, tag = 'output window, operand 0, single buffered']
    #allocation3 [shape = 's32[1]{0}', space=sflag, size = 0x4, scoped, tag = 'scoped memory for tpu_custom_call.1']
    %10 = vsyncpa [#allocation3], 0
    // Predicated region
    $region2: #{tpu_custom_call.1} parent=1 // pred_check
      _
    $region3: #{tpu_custom_call.1} parent=1 // pred_check_branch
      %12 = sbr.rel (0) target = $region5
    $region4: #{tpu_custom_call.1} parent=1 // pred_region
      _
    $region5: #{tpu_custom_call.1} parent=1 // pred_fallthru
      _
    // Predicated region
    $region6: #{tpu_custom_call.1} parent=1 // pred_check
      _
    $region7: #{tpu_custom_call.1} parent=1 // pred_check_branch
      %14 = sbr.rel (0) target = $region9
    $region8: #{tpu_custom_call.1} parent=1 // pred_region
      _
    $region9: #{tpu_custom_call.1} parent=1 // pred_fallthru
      _
    // Predicated region
    $region10: #{tpu_custom_call.1} parent=1 // pred_check
      _
    $region11: #{tpu_custom_call.1} parent=1 // pred_check_branch
      %16 = sbr.rel (0) target = $region13
    $region12: #{tpu_custom_call.1} parent=1 // pred_region
      _
    $region13: #{tpu_custom_call.1} parent=1 // pred_fallthru
      _
    // Predicated region
    $region14: #{tpu_custom_call.1} parent=1 // pred_check
      _
    $region15: #{tpu_custom_call.1} parent=1 // pred_check_branch
      %18 = sbr.rel (0) target = $region17
    $region16: #{tpu_custom_call.1} parent=1 // pred_region
      _
    $region17: #{tpu_custom_call.1} parent=1 // pred_fallthru
      _
    // Predicated region
    $region18: #{tpu_custom_call.1} parent=1 // pred_check
      _
    $region19: #{tpu_custom_call.1} parent=1 // pred_check_branch
      %20 = sbr.rel (0) target = $region21
    $region20: #{tpu_custom_call.1} parent=1 // pred_region
      _
    $region21: #{tpu_custom_call.1} parent=1 // pred_fallthru
      _
    %v21 = vld [vmem:[%s0] sm:$0xff]
    %v22 = vld [vmem:[%s1] sm:$0xff]
    %v23 = vld [vmem:[%s1 + $0x8] sm:$0xff]
    %v24 = vld [vmem:[%s1 + $0x10] sm:$0xff]
    %v25 = vld [vmem:[%s1 + $0x18] sm:$0xff]
    %v26 = vld [vmem:[%s2] sm:$0x1]
    %v28 = vperm.slane %v26, 0
    %vm30 = vcmask 261120
    %v32 = vsel %vm30, %v21, 0
    %34 = vmatpush.msra.mxu0 0.0
    %35 = vmatpush.msra.mxu0 0.0
    %36 = vmatpush.msra.mxu0 0.0
    %37 = vmatpush.msra.mxu0 0.0
    %38 = vmatpush.msra.mxu0 0.0
    %39 = vmatpush.msra.mxu0 0.0
    %40 = vmatpush.msra.mxu0 0.0
    %41 = vmatpush.msra.mxu0 0.0
    %42 = vmatpush.msra.mxu0 0.0
    %43 = vmatpush.msra.mxu0 0.0
    %44 = vmatpush.msra.mxu0 0.0
    %45 = vmatpush.msra.mxu0 0.0
    %46 = vmatpush.msra.mxu0 %v25
    %47 = vmatpush.msra.mxu0 %v24
    %48 = vmatpush.msra.mxu0 %v23
    %49 = vmatpush.msra.mxu0 %v22
    %50 = vmatmul.f32.gmra.mxu0 %v32
    %v51 = vpop.f32.mrf.mxu0
    %v52 = vadd.f32 %v28, %v51
    %53 = vdwg.mxu0
    %v54 = vmax.f32 %v52, 0.0
    %v55 = vld [vmem:[%s3] sm:$0xff]
    %v56 = vld [vmem:[%s3 + $0x8] sm:$0xff]
    %v57 = vld [vmem:[%s3 + $0x10] sm:$0xff]
    %v58 = vld [vmem:[%s3 + $0x18] sm:$0xff]
    %v59 = vld [vmem:[%s4] sm:$0x1]
    %v61 = vperm.slane %v59, 0
    %v64 = vsel %vm30, %v54, 0
    %66 = vmatpush.msra.mxu0 0.0
    %67 = vmatpush.msra.mxu0 0.0
    %68 = vmatpush.msra.mxu0 0.0
    %69 = vmatpush.msra.mxu0 0.0
    %70 = vmatpush.msra.mxu0 0.0
    %71 = vmatpush.msra.mxu0 0.0
    %72 = vmatpush.msra.mxu0 0.0
    %73 = vmatpush.msra.mxu0 0.0
    %74 = vmatpush.msra.mxu0 0.0
    %75 = vmatpush.msra.mxu0 0.0
    %76 = vmatpush.msra.mxu0 0.0
    %77 = vmatpush.msra.mxu0 0.0
    %78 = vmatpush.msra.mxu0 %v58
    %79 = vmatpush.msra.mxu0 %v57
    %80 = vmatpush.msra.mxu0 %v56
    %81 = vmatpush.msra.mxu0 %v55
    %82 = vmatmul.f32.gmra.mxu0 %v64
    %v83 = vpop.f32.mrf.mxu0
    %v84 = vadd.f32 %v61, %v83
    %85 = vdwg.mxu0
    %vm86 = vcmask 48128
    %87 = vst.msk [vmem:[#allocation2] sm:$0xff] %vm86, %v84
    // Predicated region
    $region22: #{tpu_custom_call.1} parent=1 // pred_check
      _
    $region23: #{tpu_custom_call.1} parent=1 // pred_check_branch
      %89 = sbr.rel (0) target = $region25
    $region24: #{tpu_custom_call.1} parent=1 // pred_region
      %91 = vsyncadd [#allocation3], 0
      %s93 = sshll.u32 [#allocation2], 4
      %s94 = int_to_ptr.vmem [resolvable:$true] %s93
      %s95 = sshll.u32 %s5, 4
      %s96 = int_to_ptr.hbm [resolvable:$true] %s95
      %98 = dma.vmem_to_hbm [thread:$0]  %s94, 128, %s96, [#allocation3]
    $region25: #{tpu_custom_call.1} parent=1 // pred_fallthru
      _
    // Predicated region
    $region26: #{tpu_custom_call.1} parent=1 // pred_check
      _
    $region27: #{tpu_custom_call.1} parent=1 // pred_check_branch
      %100 = sbr.rel (0) target = $region29
    $region28: #{tpu_custom_call.1} parent=1 // pred_region
      %102 = dma.done [#allocation3], 128
    $region29: #{tpu_custom_call.1} parent=1 // pred_fallthru
      _
    %103 = vsyncpa [#allocation3], 1

// kernel: tpu_custom_call.1
$region0: #{tpu_custom_call.1}
  #allocation0 [shape = 'u32[]', space=smem, size = 0x4, offset = 0x4, fixed_abs, tag = 'smem constant byte address 0x4 - core index']
  #allocation1 [shape = 'u32[72,128]{1,0:T(1,128)}', space=vmem, size = 0x9000, scoped, tag = 'internal scratch']
  %s0 = inlined_call_operand.vmem [shape: f32[8,32], index: 0, kind: input, shape index: {}]
  %s1 = inlined_call_operand.vmem [shape: f32[32,32], index: 1, kind: input, shape index: {}]
  %s2 = inlined_call_operand.vmem [shape: f32[1,32], index: 2, kind: input, shape index: {}]
  %s3 = inlined_call_operand.vmem [shape: f32[32,6], index: 3, kind: input, shape index: {}]
  %s4 = inlined_call_operand.vmem [shape: f32[1,6], index: 4, kind: input, shape index: {}]
  %s5 = inlined_call_operand.hbm [shape: f32[8,6], index: 5, kind: output, shape index: {}]
  %s6 = sld [smem:[#allocation0]]
  $region30: #{tpu_custom_call.1} parent=0
    _
  %s8 = ssub.s32 1, %s6
  %s9 = scalar_select 0, %s8, %s6
  $region1: #{tpu_custom_call.1} parent=0
    #allocation2 [shape = 'u8[4096]{0}', space=vmem, size = 0x1000, scoped, tag = 'output window, operand 0, single buffered']
    #allocation3 [shape = 's32[1]{0}', space=sflag, size = 0x4, scoped, tag = 'scoped memory for tpu_custom_call.1']
    %10 = vsyncpa [#allocation3], 0
    // Predicated region
    $region2: #{tpu_custom_call.1} parent=1 // pred_check
      _
    $region3: #{tpu_custom_call.1} parent=1 // pred_check_branch
      %12 = sbr.rel (0) target = $region5
    $region4: #{tpu_custom_call.1} parent=1 // pred_region
      _
    $region5: #{tpu_custom_call.1} parent=1 // pred_fallthru
      _
    // Predicated region
    $region6: #{tpu_custom_call.1} parent=1 // pred_check
      _
    $region7: #{tpu_custom_call.1} parent=1 // pred_check_branch
      %14 = sbr.rel (0) target = $region9
    $region8: #{tpu_custom_call.1} parent=1 // pred_region
      _
    $region9: #{tpu_custom_call.1} parent=1 // pred_fallthru
      _
    // Predicated region
    $region10: #{tpu_custom_call.1} parent=1 // pred_check
      _
    $region11: #{tpu_custom_call.1} parent=1 // pred_check_branch
      %16 = sbr.rel (0) target = $region13
    $region12: #{tpu_custom_call.1} parent=1 // pred_region
      _
    $region13: #{tpu_custom_call.1} parent=1 // pred_fallthru
      _
    // Predicated region
    $region14: #{tpu_custom_call.1} parent=1 // pred_check
      _
    $region15: #{tpu_custom_call.1} parent=1 // pred_check_branch
      %18 = sbr.rel (0) target = $region17
    $region16: #{tpu_custom_call.1} parent=1 // pred_region
      _
    $region17: #{tpu_custom_call.1} parent=1 // pred_fallthru
      _
    // Predicated region
    $region18: #{tpu_custom_call.1} parent=1 // pred_check
      _
    $region19: #{tpu_custom_call.1} parent=1 // pred_check_branch
      %20 = sbr.rel (0) target = $region21
    $region20: #{tpu_custom_call.1} parent=1 // pred_region
      _
    $region21: #{tpu_custom_call.1} parent=1 // pred_fallthru
      _
    %v21 = vld [vmem:[%s0] sm:$0xff]
    %v22 = vld [vmem:[%s1] sm:$0xff]
    %v23 = vld [vmem:[%s1 + $0x8] sm:$0xff]
    %v24 = vld [vmem:[%s1 + $0x10] sm:$0xff]
    %v25 = vld [vmem:[%s1 + $0x18] sm:$0xff]
    %v26 = vld [vmem:[%s2] sm:$0x1]
    %v28 = vperm.slane %v26, 0
    %vm30 = vcmask 261120
    %v32 = vsel %vm30, %v21, 0
    %34 = vmatpush.msra.mxu0 0.0
    %35 = vmatpush.msra.mxu0 0.0
    %36 = vmatpush.msra.mxu0 0.0
    %37 = vmatpush.msra.mxu0 0.0
    %38 = vmatpush.msra.mxu0 0.0
    %39 = vmatpush.msra.mxu0 0.0
    %40 = vmatpush.msra.mxu0 0.0
    %41 = vmatpush.msra.mxu0 0.0
    %42 = vmatpush.msra.mxu0 0.0
    %43 = vmatpush.msra.mxu0 0.0
    %44 = vmatpush.msra.mxu0 0.0
    %45 = vmatpush.msra.mxu0 0.0
    %46 = vmatpush.msra.mxu0 %v25
    %47 = vmatpush.msra.mxu0 %v24
    %48 = vmatpush.msra.mxu0 %v23
    %49 = vmatpush.msra.mxu0 %v22
    %50 = vmatmul.f32.gmra.mxu0 %v32
    %v51 = vpop.f32.mrf.mxu0
    %v52 = vadd.f32 %v28, %v51
    %53 = vdwg.mxu0
    %v54 = vmax.f32 %v52, 0.0
    %v55 = vld [vmem:[%s3] sm:$0xff]
    %v56 = vld [vmem:[%s3 + $0x8] sm:$0xff]
    %v57 = vld [vmem:[%s3 + $0x10] sm:$0xff]
    %v58 = vld [vmem:[%s3 + $0x18] sm:$0xff]
    %v59 = vld [vmem:[%s4] sm:$0x1]
    %v61 = vperm.slane %v59, 0
    %v64 = vsel %vm30, %v54, 0
    %66 = vmatpush.msra.mxu0 0.0
    %67 = vmatpush.msra.mxu0 0.0
    %68 = vmatpush.msra.mxu0 0.0
    %69 = vmatpush.msra.mxu0 0.0
    %70 = vmatpush.msra.mxu0 0.0
    %71 = vmatpush.msra.mxu0 0.0
    %72 = vmatpush.msra.mxu0 0.0
    %73 = vmatpush.msra.mxu0 0.0
    %74 = vmatpush.msra.mxu0 0.0
    %75 = vmatpush.msra.mxu0 0.0
    %76 = vmatpush.msra.mxu0 0.0
    %77 = vmatpush.msra.mxu0 0.0
    %78 = vmatpush.msra.mxu0 %v58
    %79 = vmatpush.msra.mxu0 %v57
    %80 = vmatpush.msra.mxu0 %v56
    %81 = vmatpush.msra.mxu0 %v55
    %82 = vmatmul.f32.gmra.mxu0 %v64
    %v83 = vpop.f32.mrf.mxu0
    %v84 = vadd.f32 %v61, %v83
    %85 = vdwg.mxu0
    %vm86 = vcmask 48128
    %87 = vst.msk [vmem:[#allocation2] sm:$0xff] %vm86, %v84
    // Predicated region
    $region22: #{tpu_custom_call.1} parent=1 // pred_check
      _
    $region23: #{tpu_custom_call.1} parent=1 // pred_check_branch
      %89 = sbr.rel (0) target = $region25
    $region24: #{tpu_custom_call.1} parent=1 // pred_region
      %91 = vsyncadd [#allocation3], 0
      %s93 = sshll.u32 [#allocation2], 4
      %s94 = int_to_ptr.vmem [resolvable:$true] %s93
      %s95 = sshll.u32 %s5, 4
      %s96 = int_to_ptr.hbm [resolvable:$true] %s95
      %98 = dma.vmem_to_hbm [thread:$0]  %s94, 128, %s96, [#allocation3]
    $region25: #{tpu_custom_call.1} parent=1 // pred_fallthru
      _
    // Predicated region
    $region26: #{tpu_custom_call.1} parent=1 // pred_check
      _
    $region27: #{tpu_custom_call.1} parent=1 // pred_check_branch
      %100 = sbr.rel (0) target = $region29
    $region28: #{tpu_custom_call.1} parent=1 // pred_region
      %102 = dma.done [#allocation3], 128
    $region29: #{tpu_custom_call.1} parent=1 // pred_fallthru
      _
    %103 = vsyncpa [#allocation3], 1

</llo_original>
